<compile_context>
chip_gen: v7x
topology: tpu7x:2x2x1
jax: 0.10.0
libtpu: 0.0.40
codegen_flags: <defaults>
</compile_context>

<pallas_src>
import functools

import jax
import jax.numpy as jnp
from jax.experimental import pallas as pl
from jax.experimental.pallas import tpu as pltpu


def _round_up(x, m):
    return ((x + m - 1) // m) * m


def _chip_profile():
    """(vmem_capacity_bytes, has_two_tensorcores, has_bf16_eup) with safe fallbacks."""
    kind = ""
    try:
        kind = jax.devices()[0].device_kind.lower()
    except Exception:
        pass
    vmem_cap = None
    try:
        vmem_cap = int(pltpu.get_tpu_info().vmem_capacity_bytes)
    except Exception:
        vmem_cap = None
    if vmem_cap is None:
        vmem_cap = (64 if "v7" in kind else 128) * 1024 * 1024
    two_tc = "v7" in kind                       # v7x: 2 TensorCores per chip
    bf16_eup = ("v6" in kind) or ("v7" in kind)  # v5e and older: no bf16 VPU/EUP
    return vmem_cap, two_tc, bf16_eup


def _step_work_bytes(block_b, n_pad, c):
    """Per-grid-step VMEM working set (corrected per review: ~38 B per (row, C) elem).

    x bf16 x2buf (4) + out f32 x2buf (8) + qkv bf16 scratch (6) + attn f32 scratch (4)
    + transient f32 qkv accumulator (12) + transient f32 proj result (4)  == 38 B/elem,
    plus two live (n_pad, n_pad) f32 score tiles and the single-buffered weights.
    """
    return (block_b * n_pad * c * 38
            + 2 * n_pad * n_pad * 4
            + (3 * c * c + c * c) * 2          # Wqkv^T + Wproj^T, bf16, single-buffered
            + 4 * c + 4 * n_pad)


def _pick_block_b(batch, n_pad, c, vmem_cap, two_tc):
    """Largest batch tile that fits a conservative VMEM budget; on 2-TC chips keep the
    parallel grid length even so neither TensorCore idles on a tail step."""
    budget = int(vmem_cap * 7 // 16)            # ~44% of physical, headroom for Mosaic
    fits = [d for d in range(1, batch + 1)
            if batch % d == 0 and _step_work_bytes(d, n_pad, c) <= budget]
    if not fits:
        return 1
    if two_tc:
        even = [d for d in fits if (batch // d) % 2 == 0]
        if even:
            return max(even)
    return max(fits)


def _vmem_limit_bytes(block_b, n_pad, c, vmem_cap):
    """Explicit VMEM limit: 2x the working-set estimate, capped at 5/8 of physical
    capacity (~40 MiB on v7x, 80 MiB on v5e/v6e) so compile never over-commits."""
    est = _step_work_bytes(block_b, n_pad, c)
    cap = int(vmem_cap * 5 // 8)
    return int(min(max(2 * est, 16 * 1024 * 1024), cap))


def _const_spec(shape):
    """Constant-index, single-buffered BlockSpec for weights/bias/mask (nothing to
    prefetch, so no second VMEM copy). Falls back gracefully if pipeline_mode is
    unavailable in the installed JAX."""
    imap = lambda b: (0,) * len(shape)
    try:
        return pl.BlockSpec(shape, imap, pipeline_mode=pl.Buffered(1))
    except (TypeError, AttributeError):
        return pl.BlockSpec(shape, imap)


def _attention_kernel(x_ref, wqkv_ref, wproj_ref, bproj_ref, kmask_ref, o_ref,
                      qkv_scr, attn_scr, *, num_heads, n_valid, exp_bf16):
    bt, n_pad, c = x_ref.shape
    hd = c // num_heads
    rows = bt * n_pad

    # ---- qkv projection: one (bt*n_pad, C) x (C, 3C) bf16 MXU matmul ----
    # f32 accumulator dies at the bf16 scratch store (no dual f32+bf16 slabs alive).
    qkv_scr[...] = jnp.dot(x_ref[...].reshape(rows, c), wqkv_ref[...],
                           preferred_element_type=jnp.float32).astype(jnp.bfloat16)

    pad_keys = n_valid < n_pad
    kbias = kmask_ref[...]                       # (1, n_pad) additive key mask, hoisted
    nt_dims = (((1,), (1,)), ((), ()))           # contract last dims: q @ k^T, no k.T

    def per_batch(row0):
        # Heads: static unroll with static lane offsets; every head writes its result
        # straight into attn_scr, so only one (n_pad, n_pad) score tile is live at a
        # time (review: no head/batch concat, bounded vreg/VMEM pressure).
        for h in range(num_heads):
            lo = h * hd
            qh = qkv_scr[pl.ds(row0, n_pad), lo:lo + hd]            # scale folded in Wq
            kh = qkv_scr[pl.ds(row0, n_pad), c + lo:c + lo + hd]
            vh = qkv_scr[pl.ds(row0, n_pad), 2 * c + lo:2 * c + lo + hd]

            s = jax.lax.dot_general(qh, kh, nt_dims,
                                    preferred_element_type=jnp.float32)  # (n_pad, n_pad)
            if pad_keys:
                s = s + kbias                                        # one VPU add
            s = s - jnp.max(s, axis=-1, keepdims=True)
            if exp_bf16:
                # v6e/v7x: bf16 EUP/VPU halves the softmax stretch; f32 row sum.
                p = jnp.exp(s.astype(jnp.bfloat16))
                denom = jnp.sum(p, axis=-1, keepdims=True, dtype=jnp.float32)
                p = p * pl.reciprocal(denom, approx=True).astype(jnp.bfloat16)
            else:
                # v5e: keep softmax math in f32 (no bf16 VPU/EUP).
                p = jnp.exp(s)
                denom = jnp.sum(p, axis=-1, keepdims=True)
                p = (p * pl.reciprocal(denom, approx=True)).astype(jnp.bfloat16)

            attn_scr[pl.ds(row0, n_pad), lo:lo + hd] = jnp.dot(
                p, vh, preferred_element_type=jnp.float32)

    if bt == 1:
        per_batch(0)
    else:
        # Bounded loop over batch elements inside the block (no bt*H mega-unroll).
        def body(b, carry):
            per_batch(pl.multiple_of(b * n_pad, n_pad))
            return carry
        jax.lax.fori_loop(0, bt, body, 0)

    # ---- output projection: (bt*n_pad, C) x (C, C) bf16 MXU matmul + f32 bias ----
    out = jnp.dot(attn_scr[...].astype(jnp.bfloat16), wproj_ref[...],
                  preferred_element_type=jnp.float32) + bproj_ref[...]
    o_ref[...] = out.reshape(bt, n_pad, c).astype(o_ref.dtype)


def attention_pallas(x, wqkv, wproj, bproj, *, num_heads, block_b=None, out_dtype=None):
    """DeiT attention forward.

    x: (B, N, C) float32
    wqkv:  (3C, C)  -- nn.Linear(dim, 3*dim, bias=False).weight
    wproj: (C, C)   -- nn.Linear(dim, dim).weight
    bproj: (C,)     -- nn.Linear(dim, dim).bias
    """
    B, N, C = x.shape
    assert C % num_heads == 0
    head_dim = C // num_heads
    scale = head_dim ** -0.5

    # Pad the sequence so (N, N) score tiles and (N, C) slabs are sublane/lane friendly
    # (e.g. DeiT's 197 -> 256).
    n_pad = _round_up(N, 128 if N > 128 else 8)

    vmem_cap, two_tc, bf16_eup = _chip_profile()
    if block_b is None:
        block_b = _pick_block_b(B, n_pad, C, vmem_cap, two_tc)
    assert B % block_b == 0

    # Wrapper-side weight prep: transpose to (in, out), fold the softmax scale into
    # the Q columns, cast MXU operands to bf16.
    # (Further v5e/v6e option: int8 projection weights; v6e/v7x option: pad head_dim
    #  to 128 lanes for alignment -- not taken here, projections dominate FLOPs.)
    col_scale = jnp.concatenate([jnp.full((C,), scale, jnp.float32),
                                 jnp.ones((2 * C,), jnp.float32)])
    wqkv_t = (wqkv.T.astype(jnp.float32) * col_scale[None, :]).astype(jnp.bfloat16)
    wproj_t = wproj.T.astype(jnp.bfloat16)
    bproj2d = bproj.reshape(1, C).astype(jnp.float32)

    # Hoisted additive key-padding bias: 0 for valid keys, -1e30 for padded keys.
    kmask = jnp.where(jnp.arange(n_pad) < N, 0.0, -1e30).astype(jnp.float32)
    kmask = kmask.reshape(1, n_pad)

    x_pad = x if n_pad == N else jnp.pad(x, ((0, 0), (0, n_pad - N), (0, 0)))
    x_pad = x_pad.astype(jnp.bfloat16)

    out_dtype = x.dtype if out_dtype is None else out_dtype
    rows = block_b * n_pad

    kernel = functools.partial(_attention_kernel, num_heads=num_heads,
                               n_valid=N, exp_bf16=bf16_eup)

    out_pad = pl.pallas_call(
        kernel,
        out_shape=jax.ShapeDtypeStruct((B, n_pad, C), out_dtype),
        grid_spec=pltpu.PrefetchScalarGridSpec(
            num_scalar_prefetch=0,
            grid=(B // block_b,),
            in_specs=[
                pl.BlockSpec((block_b, n_pad, C), lambda b: (b, 0, 0)),  # x (bf16)
                _const_spec((C, 3 * C)),                                 # Wqkv^T (bf16)
                _const_spec((C, C)),                                     # Wproj^T (bf16)
                _const_spec((1, C)),                                     # bias (f32)
                _const_spec((1, n_pad)),                                 # key mask (f32)
            ],
            out_specs=pl.BlockSpec((block_b, n_pad, C), lambda b: (b, 0, 0)),
            scratch_shapes=[
                pltpu.VMEM((rows, 3 * C), jnp.bfloat16),                 # qkv slab
                pltpu.VMEM((rows, C), jnp.float32),                      # attn output
            ],
        ),
        compiler_params=pltpu.CompilerParams(
            dimension_semantics=("parallel",),
            vmem_limit_bytes=_vmem_limit_bytes(block_b, n_pad, C, vmem_cap),
        ),
    )(x_pad, wqkv_t, wproj_t, bproj2d, kmask)

    return out_pad[:, :N, :]


def attention_reference(x, wqkv, wproj, bproj, *, num_heads):
    """Pure-JAX f32 reference mirroring the PyTorch forward (unmodified weights)."""
    B, N, C = x.shape
    head_dim = C // num_heads
    scale = head_dim ** -0.5

    qkv = x @ wqkv.T                                              # (B, N, 3C)
    qkv = qkv.reshape(B, N, 3, num_heads, head_dim)
    qkv = jnp.transpose(qkv, (2, 0, 3, 1, 4))                     # (3, B, H, N, hd)
    q, k, v = qkv[0] * scale, qkv[1], qkv[2]
    attn = jax.nn.softmax(q @ jnp.swapaxes(k, -2, -1), axis=-1)   # (B, H, N, N)
    out = attn @ v                                                # (B, H, N, hd)
    out = jnp.transpose(out, (0, 2, 1, 3)).reshape(B, N, C)
    return out @ wproj.T + bproj


if __name__ == "__main__":
    # Small DeiT-style block: B=2, N=10 tokens (exercises padding + key masking),
    # C=128, 4 heads (head_dim=32 exercises real lane-slice paths).
    B, N, C, num_heads = 2, 10, 128, 4

    key = jax.random.PRNGKey(0)
    k_x, k_wqkv, k_wproj, k_bproj = jax.random.split(key, 4)

    x = jax.random.normal(k_x, (B, N, C), dtype=jnp.float32)
    wqkv = jax.random.normal(k_wqkv, (3 * C, C), dtype=jnp.float32) * 0.05
    wproj = jax.random.normal(k_wproj, (C, C), dtype=jnp.float32) * 0.05
    bproj = jax.random.normal(k_bproj, (C,), dtype=jnp.float32) * 0.05

    out = attention_pallas(x, wqkv, wproj, bproj, num_heads=num_heads)
    out = jax.block_until_ready(out)

    ref = attention_reference(x, wqkv, wproj, bproj, num_heads=num_heads)
    assert out.shape == (B, N, C)
    max_err = float(jnp.max(jnp.abs(out - ref)))
    # bf16 MXU operands + (optional) bf16 softmax + approx EUP reciprocal -> small,
    # inference-acceptable drift.
    assert max_err < 2e-2, f"mismatch vs reference: max abs err {max_err}"

    print("KERNEL_OK")
</pallas_src>

<mosaic_0001>
module attributes {stable_mosaic.version = 11 : i64} {
  func.func @_attention_kernel(%arg0: i32, %arg1: memref<2x16x128xbf16, #tpu.memory_space<vmem>>, %arg2: memref<128x384xbf16, #tpu.memory_space<vmem>>, %arg3: memref<128x128xbf16, #tpu.memory_space<vmem>>, %arg4: memref<1x128xf32, #tpu.memory_space<vmem>>, %arg5: memref<1x16xf32, #tpu.memory_space<vmem>>, %arg6: memref<2x16x128xf32, #tpu.memory_space<vmem>>, %arg7: memref<32x384xbf16, #tpu.memory_space<vmem>>, %arg8: memref<32x128xf32, #tpu.memory_space<vmem>>) attributes {dimension_semantics = [#tpu.dimension_semantics<parallel>], iteration_bounds = array<i64: 1>, scalar_prefetch = 0 : i64, scratch_operands = 2 : i64, tpu.core_type = #tpu.core_type<tc>, window_params = [{transform_indices = @transform_0, window_bounds = array<i64: 2, 16, 128>}, {pipeline_mode = #tpu.pipeline_mode<synchronous>, transform_indices = @transform_1, window_bounds = array<i64: 128, 384>}, {pipeline_mode = #tpu.pipeline_mode<synchronous>, transform_indices = @transform_2, window_bounds = array<i64: 128, 128>}, {pipeline_mode = #tpu.pipeline_mode<synchronous>, transform_indices = @transform_3, window_bounds = array<i64: 1, 128>}, {pipeline_mode = #tpu.pipeline_mode<synchronous>, transform_indices = @transform_4, window_bounds = array<i64: 1, 16>}, {transform_indices = @transform_5, window_bounds = array<i64: 2, 16, 128>}]} {
    %c0 = arith.constant 0 : index
    %c0_0 = arith.constant 0 : index
    %c0_1 = arith.constant 0 : index
    %0 = vector.load %arg1[%c0, %c0_0, %c0_1] : memref<2x16x128xbf16, #tpu.memory_space<vmem>>, vector<2x16x128xbf16>
    %1 = vector.shape_cast %0 : vector<2x16x128xbf16> to vector<32x128xbf16>
    %c0_2 = arith.constant 0 : index
    %c0_3 = arith.constant 0 : index
    %2 = vector.load %arg2[%c0_2, %c0_3] : memref<128x384xbf16, #tpu.memory_space<vmem>>, vector<128x384xbf16>
    %cst = arith.constant dense<0.000000e+00> : vector<32x384xf32>
    %3 = tpu.matmul %1, %2, %cst {dimension_numbers = #tpu.dot_dimension_numbers<[1], [0], [0], [1], [0, 0, 1, 1], [], []>} : vector<32x128xbf16>, vector<128x384xbf16>, vector<32x384xf32> -> vector<32x384xf32>
    %4 = arith.truncf %3 : vector<32x384xf32> to vector<32x384xbf16>
    %c0_4 = arith.constant 0 : index
    %c0_5 = arith.constant 0 : index
    %5 = vector.load %arg7[%c0_4, %c0_5] : memref<32x384xbf16, #tpu.memory_space<vmem>>, vector<32x384xbf16>
    tpu.vector_store %arg7[%c0_4, %c0_5], %4 {strides = array<i32>} : memref<32x384xbf16, #tpu.memory_space<vmem>>, vector<32x384xbf16>,
    %c0_6 = arith.constant 0 : index
    %c0_7 = arith.constant 0 : index
    %6 = vector.load %arg5[%c0_6, %c0_7] : memref<1x16xf32, #tpu.memory_space<vmem>>, vector<1x16xf32>
    %c0_i32 = arith.constant 0 : i32
    %c2_i32 = arith.constant 2 : i32
    %7 = arith.addi %c0_i32, %c2_i32 : i32
    %c1_i32 = arith.constant 1 : i32
    scf.for %arg9 = %c0_i32 to %7 step %c1_i32  : i32 {
      %c16_i32 = arith.constant 16 : i32
      %17 = arith.muli %arg9, %c16_i32 : i32
      %18 = tpu.assume_multiple %17, 16 : i32
      %19 = arith.index_cast %18 : i32 to index
      %c0_19 = arith.constant 0 : index
      %20 = vector.load %arg7[%19, %c0_19] : memref<32x384xbf16, #tpu.memory_space<vmem>>, vector<16x32xbf16>
      %21 = arith.index_cast %18 : i32 to index
      %c128 = arith.constant 128 : index
      %22 = vector.load %arg7[%21, %c128] : memref<32x384xbf16, #tpu.memory_space<vmem>>, vector<16x32xbf16>
      %23 = arith.index_cast %18 : i32 to index
      %c256 = arith.constant 256 : index
      %24 = vector.load %arg7[%23, %c256] : memref<32x384xbf16, #tpu.memory_space<vmem>>, vector<16x32xbf16>
      %cst_20 = arith.constant dense<0.000000e+00> : vector<16x16xf32>
      %25 = tpu.matmul %20, %22, %cst_20 {dimension_numbers = #tpu.dot_dimension_numbers<[1], [1], [0], [0], [0, 0, 1, 0], [], []>} : vector<16x32xbf16>, vector<16x32xbf16>, vector<16x16xf32> -> vector<16x16xf32>
      %26 = vector.broadcast %6 : vector<1x16xf32> to vector<16x16xf32>
      %27 = arith.addf %25, %26 : vector<16x16xf32>
      %cst_21 = arith.constant dense<0xFF800000> : vector<16xf32>
      %28 = vector.multi_reduction <maximumf>, %27, %cst_21 [1] : vector<16x16xf32> to vector<16xf32>
      %29 = vector.shape_cast %28 : vector<16xf32> to vector<16x1xf32>
      %30 = vector.broadcast %29 : vector<16x1xf32> to vector<16x16xf32>
      %31 = arith.subf %27, %30 : vector<16x16xf32>
      %32 = math.exp %31 : vector<16x16xf32>
      %cst_22 = arith.constant dense<0.000000e+00> : vector<16xf32>
      %33 = vector.multi_reduction <add>, %32, %cst_22 [1] : vector<16x16xf32> to vector<16xf32>
      %34 = vector.shape_cast %33 : vector<16xf32> to vector<16x1xf32>
      %35 = tpu.reciprocal %34 {approx = true} : vector<16x1xf32> -> vector<16x1xf32>
      %36 = vector.broadcast %35 : vector<16x1xf32> to vector<16x16xf32>
      %37 = arith.mulf %32, %36 : vector<16x16xf32>
      %38 = arith.truncf %37 : vector<16x16xf32> to vector<16x16xbf16>
      %cst_23 = arith.constant dense<0.000000e+00> : vector<16x32xf32>
      %39 = tpu.matmul %38, %24, %cst_23 {dimension_numbers = #tpu.dot_dimension_numbers<[1], [0], [0], [1], [0, 0, 1, 1], [], []>} : vector<16x16xbf16>, vector<16x32xbf16>, vector<16x32xf32> -> vector<16x32xf32>
      %40 = arith.index_cast %18 : i32 to index
      %c0_24 = arith.constant 0 : index
      %41 = vector.load %arg8[%40, %c0_24] : memref<32x128xf32, #tpu.memory_space<vmem>>, vector<16x32xf32>
      tpu.vector_store %arg8[%40, %c0_24], %39 {strides = array<i32>} : memref<32x128xf32, #tpu.memory_space<vmem>>, vector<16x32xf32>,
      %42 = arith.index_cast %18 : i32 to index
      %c32 = arith.constant 32 : index
      %43 = vector.load %arg7[%42, %c32] : memref<32x384xbf16, #tpu.memory_space<vmem>>, vector<16x32xbf16>
      %44 = arith.index_cast %18 : i32 to index
      %c160 = arith.constant 160 : index
      %45 = vector.load %arg7[%44, %c160] : memref<32x384xbf16, #tpu.memory_space<vmem>>, vector<16x32xbf16>
      %46 = arith.index_cast %18 : i32 to index
      %c288 = arith.constant 288 : index
      %47 = vector.load %arg7[%46, %c288] : memref<32x384xbf16, #tpu.memory_space<vmem>>, vector<16x32xbf16>
      %cst_25 = arith.constant dense<0.000000e+00> : vector<16x16xf32>
      %48 = tpu.matmul %43, %45, %cst_25 {dimension_numbers = #tpu.dot_dimension_numbers<[1], [1], [0], [0], [0, 0, 1, 0], [], []>} : vector<16x32xbf16>, vector<16x32xbf16>, vector<16x16xf32> -> vector<16x16xf32>
      %49 = vector.broadcast %6 : vector<1x16xf32> to vector<16x16xf32>
      %50 = arith.addf %48, %49 : vector<16x16xf32>
      %cst_26 = arith.constant dense<0xFF800000> : vector<16xf32>
      %51 = vector.multi_reduction <maximumf>, %50, %cst_26 [1] : vector<16x16xf32> to vector<16xf32>
      %52 = vector.shape_cast %51 : vector<16xf32> to vector<16x1xf32>
      %53 = vector.broadcast %52 : vector<16x1xf32> to vector<16x16xf32>
      %54 = arith.subf %50, %53 : vector<16x16xf32>
      %55 = math.exp %54 : vector<16x16xf32>
      %cst_27 = arith.constant dense<0.000000e+00> : vector<16xf32>
      %56 = vector.multi_reduction <add>, %55, %cst_27 [1] : vector<16x16xf32> to vector<16xf32>
      %57 = vector.shape_cast %56 : vector<16xf32> to vector<16x1xf32>
      %58 = tpu.reciprocal %57 {approx = true} : vector<16x1xf32> -> vector<16x1xf32>
      %59 = vector.broadcast %58 : vector<16x1xf32> to vector<16x16xf32>
      %60 = arith.mulf %55, %59 : vector<16x16xf32>
      %61 = arith.truncf %60 : vector<16x16xf32> to vector<16x16xbf16>
      %cst_28 = arith.constant dense<0.000000e+00> : vector<16x32xf32>
      %62 = tpu.matmul %61, %47, %cst_28 {dimension_numbers = #tpu.dot_dimension_numbers<[1], [0], [0], [1], [0, 0, 1, 1], [], []>} : vector<16x16xbf16>, vector<16x32xbf16>, vector<16x32xf32> -> vector<16x32xf32>
      %63 = arith.index_cast %18 : i32 to index
      %c32_29 = arith.constant 32 : index
      %64 = vector.load %arg8[%63, %c32_29] : memref<32x128xf32, #tpu.memory_space<vmem>>, vector<16x32xf32>
      tpu.vector_store %arg8[%63, %c32_29], %62 {strides = array<i32>} : memref<32x128xf32, #tpu.memory_space<vmem>>, vector<16x32xf32>,
      %65 = arith.index_cast %18 : i32 to index
      %c64 = arith.constant 64 : index
      %66 = vector.load %arg7[%65, %c64] : memref<32x384xbf16, #tpu.memory_space<vmem>>, vector<16x32xbf16>
      %67 = arith.index_cast %18 : i32 to index
      %c192 = arith.constant 192 : index
      %68 = vector.load %arg7[%67, %c192] : memref<32x384xbf16, #tpu.memory_space<vmem>>, vector<16x32xbf16>
      %69 = arith.index_cast %18 : i32 to index
      %c320 = arith.constant 320 : index
      %70 = vector.load %arg7[%69, %c320] : memref<32x384xbf16, #tpu.memory_space<vmem>>, vector<16x32xbf16>
      %cst_30 = arith.constant dense<0.000000e+00> : vector<16x16xf32>
      %71 = tpu.matmul %66, %68, %cst_30 {dimension_numbers = #tpu.dot_dimension_numbers<[1], [1], [0], [0], [0, 0, 1, 0], [], []>} : vector<16x32xbf16>, vector<16x32xbf16>, vector<16x16xf32> -> vector<16x16xf32>
      %72 = vector.broadcast %6 : vector<1x16xf32> to vector<16x16xf32>
      %73 = arith.addf %71, %72 : vector<16x16xf32>
      %cst_31 = arith.constant dense<0xFF800000> : vector<16xf32>
      %74 = vector.multi_reduction <maximumf>, %73, %cst_31 [1] : vector<16x16xf32> to vector<16xf32>
      %75 = vector.shape_cast %74 : vector<16xf32> to vector<16x1xf32>
      %76 = vector.broadcast %75 : vector<16x1xf32> to vector<16x16xf32>
      %77 = arith.subf %73, %76 : vector<16x16xf32>
      %78 = math.exp %77 : vector<16x16xf32>
      %cst_32 = arith.constant dense<0.000000e+00> : vector<16xf32>
      %79 = vector.multi_reduction <add>, %78, %cst_32 [1] : vector<16x16xf32> to vector<16xf32>
      %80 = vector.shape_cast %79 : vector<16xf32> to vector<16x1xf32>
      %81 = tpu.reciprocal %80 {approx = true} : vector<16x1xf32> -> vector<16x1xf32>
      %82 = vector.broadcast %81 : vector<16x1xf32> to vector<16x16xf32>
      %83 = arith.mulf %78, %82 : vector<16x16xf32>
      %84 = arith.truncf %83 : vector<16x16xf32> to vector<16x16xbf16>
      %cst_33 = arith.constant dense<0.000000e+00> : vector<16x32xf32>
      %85 = tpu.matmul %84, %70, %cst_33 {dimension_numbers = #tpu.dot_dimension_numbers<[1], [0], [0], [1], [0, 0, 1, 1], [], []>} : vector<16x16xbf16>, vector<16x32xbf16>, vector<16x32xf32> -> vector<16x32xf32>
      %86 = arith.index_cast %18 : i32 to index
      %c64_34 = arith.constant 64 : index
      %87 = vector.load %arg8[%86, %c64_34] : memref<32x128xf32, #tpu.memory_space<vmem>>, vector<16x32xf32>
      tpu.vector_store %arg8[%86, %c64_34], %85 {strides = array<i32>} : memref<32x128xf32, #tpu.memory_space<vmem>>, vector<16x32xf32>,
      %88 = arith.index_cast %18 : i32 to index
      %c96 = arith.constant 96 : index
      %89 = vector.load %arg7[%88, %c96] : memref<32x384xbf16, #tpu.memory_space<vmem>>, vector<16x32xbf16>
      %90 = arith.index_cast %18 : i32 to index
      %c224 = arith.constant 224 : index
      %91 = vector.load %arg7[%90, %c224] : memref<32x384xbf16, #tpu.memory_space<vmem>>, vector<16x32xbf16>
      %92 = arith.index_cast %18 : i32 to index
      %c352 = arith.constant 352 : index
      %93 = vector.load %arg7[%92, %c352] : memref<32x384xbf16, #tpu.memory_space<vmem>>, vector<16x32xbf16>
      %cst_35 = arith.constant dense<0.000000e+00> : vector<16x16xf32>
      %94 = tpu.matmul %89, %91, %cst_35 {dimension_numbers = #tpu.dot_dimension_numbers<[1], [1], [0], [0], [0, 0, 1, 0], [], []>} : vector<16x32xbf16>, vector<16x32xbf16>, vector<16x16xf32> -> vector<16x16xf32>
      %95 = vector.broadcast %6 : vector<1x16xf32> to vector<16x16xf32>
      %96 = arith.addf %94, %95 : vector<16x16xf32>
      %cst_36 = arith.constant dense<0xFF800000> : vector<16xf32>
      %97 = vector.multi_reduction <maximumf>, %96, %cst_36 [1] : vector<16x16xf32> to vector<16xf32>
      %98 = vector.shape_cast %97 : vector<16xf32> to vector<16x1xf32>
      %99 = vector.broadcast %98 : vector<16x1xf32> to vector<16x16xf32>
      %100 = arith.subf %96, %99 : vector<16x16xf32>
      %101 = math.exp %100 : vector<16x16xf32>
      %cst_37 = arith.constant dense<0.000000e+00> : vector<16xf32>
      %102 = vector.multi_reduction <add>, %101, %cst_37 [1] : vector<16x16xf32> to vector<16xf32>
      %103 = vector.shape_cast %102 : vector<16xf32> to vector<16x1xf32>
      %104 = tpu.reciprocal %103 {approx = true} : vector<16x1xf32> -> vector<16x1xf32>
      %105 = vector.broadcast %104 : vector<16x1xf32> to vector<16x16xf32>
      %106 = arith.mulf %101, %105 : vector<16x16xf32>
      %107 = arith.truncf %106 : vector<16x16xf32> to vector<16x16xbf16>
      %cst_38 = arith.constant dense<0.000000e+00> : vector<16x32xf32>
      %108 = tpu.matmul %107, %93, %cst_38 {dimension_numbers = #tpu.dot_dimension_numbers<[1], [0], [0], [1], [0, 0, 1, 1], [], []>} : vector<16x16xbf16>, vector<16x32xbf16>, vector<16x32xf32> -> vector<16x32xf32>
      %109 = arith.index_cast %18 : i32 to index
      %c96_39 = arith.constant 96 : index
      %110 = vector.load %arg8[%109, %c96_39] : memref<32x128xf32, #tpu.memory_space<vmem>>, vector<16x32xf32>
      tpu.vector_store %arg8[%109, %c96_39], %108 {strides = array<i32>} : memref<32x128xf32, #tpu.memory_space<vmem>>, vector<16x32xf32>,
    }
    %c2_i32_8 = arith.constant 2 : i32
    %c0_9 = arith.constant 0 : index
    %c0_10 = arith.constant 0 : index
    %8 = vector.load %arg8[%c0_9, %c0_10] : memref<32x128xf32, #tpu.memory_space<vmem>>, vector<32x128xf32>
    %9 = arith.truncf %8 : vector<32x128xf32> to vector<32x128xbf16>
    %c0_11 = arith.constant 0 : index
    %c0_12 = arith.constant 0 : index
    %10 = vector.load %arg3[%c0_11, %c0_12] : memref<128x128xbf16, #tpu.memory_space<vmem>>, vector<128x128xbf16>
    %cst_13 = arith.constant dense<0.000000e+00> : vector<32x128xf32>
    %11 = tpu.matmul %9, %10, %cst_13 {dimension_numbers = #tpu.dot_dimension_numbers<[1], [0], [0], [1], [0, 0, 1, 1], [], []>} : vector<32x128xbf16>, vector<128x128xbf16>, vector<32x128xf32> -> vector<32x128xf32>
    %c0_14 = arith.constant 0 : index
    %c0_15 = arith.constant 0 : index
    %12 = vector.load %arg4[%c0_14, %c0_15] : memref<1x128xf32, #tpu.memory_space<vmem>>, vector<1x128xf32>
    %13 = vector.broadcast %12 : vector<1x128xf32> to vector<32x128xf32>
    %14 = arith.addf %11, %13 : vector<32x128xf32>
    %15 = vector.shape_cast %14 : vector<32x128xf32> to vector<2x16x128xf32>
    %c0_16 = arith.constant 0 : index
    %c0_17 = arith.constant 0 : index
    %c0_18 = arith.constant 0 : index
    %16 = vector.load %arg6[%c0_16, %c0_17, %c0_18] : memref<2x16x128xf32, #tpu.memory_space<vmem>>, vector<2x16x128xf32>
    tpu.vector_store %arg6[%c0_16, %c0_17, %c0_18], %15 {strides = array<i32>} : memref<2x16x128xf32, #tpu.memory_space<vmem>>, vector<2x16x128xf32>,
    return
  }
  func.func @transform_0(%arg0: i32) -> (i32, i32, i32) {
    %c0_i32 = arith.constant 0 : i32
    %c0_i32_0 = arith.constant 0 : i32
    %c0_i32_1 = arith.constant 0 : i32
    return %arg0, %c0_i32, %c0_i32_0 : i32, i32, i32
  }
  func.func @transform_1(%arg0: i32) -> (i32, i32) {
    %c0_i32 = arith.constant 0 : i32
    %c0_i32_0 = arith.constant 0 : i32
    %c0_i32_1 = arith.constant 0 : i32
    return %c0_i32, %c0_i32_0 : i32, i32
  }
  func.func @transform_2(%arg0: i32) -> (i32, i32) {
    %c0_i32 = arith.constant 0 : i32
    %c0_i32_0 = arith.constant 0 : i32
    %c0_i32_1 = arith.constant 0 : i32
    return %c0_i32, %c0_i32_0 : i32, i32
  }
  func.func @transform_3(%arg0: i32) -> (i32, i32) {
    %c0_i32 = arith.constant 0 : i32
    %c0_i32_0 = arith.constant 0 : i32
    %c0_i32_1 = arith.constant 0 : i32
    return %c0_i32, %c0_i32_0 : i32, i32
  }
  func.func @transform_4(%arg0: i32) -> (i32, i32) {
    %c0_i32 = arith.constant 0 : i32
    %c0_i32_0 = arith.constant 0 : i32
    %c0_i32_1 = arith.constant 0 : i32
    return %c0_i32, %c0_i32_0 : i32, i32
  }
  func.func @transform_5(%arg0: i32) -> (i32, i32, i32) {
    %c0_i32 = arith.constant 0 : i32
    %c0_i32_0 = arith.constant 0 : i32
    %c0_i32_1 = arith.constant 0 : i32
    return %arg0, %c0_i32, %c0_i32_0 : i32, i32, i32
  }
}

</mosaic_0001>

<llo_original>
// kernel: tpu_custom_call.1
$region0: #{tpu_custom_call.1}
  #allocation0 [shape = 'u32[]', space=smem, size = 0x4, offset = 0x4, fixed_abs, tag = 'smem constant byte address 0x4 - core index']
  #allocation1 [shape = 'u32[144,128]{1,0:T(1,128)}', space=vmem, size = 0x12000, scoped, tag = 'internal scratch']
  #allocation2 [shape = 'bf16[32,384]{1,0:T(16,128)(2,1)}', space=vmem, size = 0x6000, scoped, tag = 'scratch operand']
  #allocation3 [shape = 'f32[32,128]{1,0:T(8,128)}', space=vmem, size = 0x4000, scoped, tag = 'scratch operand']
  %s0 = inlined_call_operand.hbm [shape: bf16[2,16,128], index: 0, kind: input, shape index: {}]
  %s1 = inlined_call_operand.hbm [shape: bf16[128,384], index: 1, kind: input, shape index: {}]
  %s2 = inlined_call_operand.hbm [shape: bf16[128,128], index: 2, kind: input, shape index: {}]
  %s3 = inlined_call_operand.vmem [shape: f32[1,128], index: 3, kind: input, shape index: {}]
  %s4 = inlined_call_operand.vmem [shape: f32[1,16], index: 4, kind: input, shape index: {}]
  %s5 = inlined_call_operand.hbm [shape: f32[2,16,128], index: 5, kind: output, shape index: {}]
  %s6 = sld [smem:[#allocation0]]
  $region49: #{tpu_custom_call.1} parent=0
    _
  %s8 = ssub.s32 1, %s6
  %s9 = scalar_select 0, %s8, %s6
  $region1: #{tpu_custom_call.1} parent=0
    #allocation4 [shape = 'u8[8192]{0}', space=vmem, size = 0x2000, scoped, tag = 'input window, operand 0, single buffered']
    #allocation5 [shape = 's32[1]{0}', space=sflag, size = 0x4, scoped, tag = 'scoped memory for tpu_custom_call.1']
    #allocation6 [shape = 's32[1]{0}', space=sflag, size = 0x4, scoped, tag = 'scoped memory for tpu_custom_call.1']
    #allocation7 [shape = 'u8[98304]{0}', space=vmem, size = 0x18000, scoped, tag = 'input window, operand 1, single buffered']
    #allocation8 [shape = 's32[1]{0}', space=sflag, size = 0x4, scoped, tag = 'scoped memory for tpu_custom_call.1']
    #allocation9 [shape = 'u8[32768]{0}', space=vmem, size = 0x8000, scoped, tag = 'input window, operand 2, single buffered']
    #allocation10 [shape = 'u8[16384]{0}', space=vmem, size = 0x4000, scoped, tag = 'output window, operand 0, single buffered']
    %10 = vsyncpa [#allocation5], 0
    %11 = vsyncpa [#allocation8], 0
    %12 = vsyncpa [#allocation6], 0
    // Predicated region
    $region2: #{tpu_custom_call.1} parent=1 // pred_check
      _
    $region3: #{tpu_custom_call.1} parent=1 // pred_check_branch
      %14 = sbr.rel (0) target = $region5
    $region4: #{tpu_custom_call.1} parent=1 // pred_region
      %s16 = ssub.s32 256, 256
      %17 = vsyncadd [#allocation5], %s16
      %s18 = sshll.u32 [#allocation4], 4
      %s19 = int_to_ptr.vmem [resolvable:$true] %s18
      %24 = dma.hbm_to_vmem [thread:$0]  %s0, 256, %s19, [#allocation5], 64, 64, 4
    $region5: #{tpu_custom_call.1} parent=1 // pred_fallthru
      _
    // Predicated region
    $region6: #{tpu_custom_call.1} parent=1 // pred_check
      _
    $region7: #{tpu_custom_call.1} parent=1 // pred_check_branch
      %26 = sbr.rel (0) target = $region9
    $region8: #{tpu_custom_call.1} parent=1 // pred_region
      %s28 = ssub.s32 3072, 3072
      %29 = vsyncadd [#allocation8], %s28
      %s30 = sshll.u32 [#allocation7], 4
      %s31 = int_to_ptr.vmem [resolvable:$true] %s30
      %36 = dma.hbm_to_vmem [thread:$0]  %s1, 3072, %s31, [#allocation8], 192, 192, 12
    $region9: #{tpu_custom_call.1} parent=1 // pred_fallthru
      _
    // Predicated region
    $region10: #{tpu_custom_call.1} parent=1 // pred_check
      _
    $region11: #{tpu_custom_call.1} parent=1 // pred_check_branch
      %38 = sbr.rel (0) target = $region13
    $region12: #{tpu_custom_call.1} parent=1 // pred_region
      %s40 = ssub.s32 1024, 1024
      %41 = vsyncadd [#allocation8], %s40
      %s42 = sshll.u32 [#allocation9], 4
      %s43 = int_to_ptr.vmem [resolvable:$true] %s42
      %48 = dma.hbm_to_vmem [thread:$0]  %s2, 1024, %s43, [#allocation8], 64, 64, 4
    $region13: #{tpu_custom_call.1} parent=1 // pred_fallthru
      _
    // Predicated region
    $region14: #{tpu_custom_call.1} parent=1 // pred_check
      _
    $region15: #{tpu_custom_call.1} parent=1 // pred_check_branch
      %50 = sbr.rel (0) target = $region17
    $region16: #{tpu_custom_call.1} parent=1 // pred_region
      _
    $region17: #{tpu_custom_call.1} parent=1 // pred_fallthru
      _
    // Predicated region
    $region18: #{tpu_custom_call.1} parent=1 // pred_check
      _
    $region19: #{tpu_custom_call.1} parent=1 // pred_check_branch
      %52 = sbr.rel (0) target = $region21
    $region20: #{tpu_custom_call.1} parent=1 // pred_region
      _
    $region21: #{tpu_custom_call.1} parent=1 // pred_fallthru
      _
    // Predicated region
    $region22: #{tpu_custom_call.1} parent=1 // pred_check
      _
    $region23: #{tpu_custom_call.1} parent=1 // pred_check_branch
      %54 = sbr.rel (0) target = $region25
    $region24: #{tpu_custom_call.1} parent=1 // pred_region
      %55 = dma.done [#allocation5], 256
    $region25: #{tpu_custom_call.1} parent=1 // pred_fallthru
      _
    // Predicated region
    $region26: #{tpu_custom_call.1} parent=1 // pred_check
      _
    $region27: #{tpu_custom_call.1} parent=1 // pred_check_branch
      %57 = sbr.rel (0) target = $region29
    $region28: #{tpu_custom_call.1} parent=1 // pred_region
      %58 = dma.done [#allocation8], 3072
    $region29: #{tpu_custom_call.1} parent=1 // pred_fallthru
      _
    // Predicated region
    $region30: #{tpu_custom_call.1} parent=1 // pred_check
      _
    $region31: #{tpu_custom_call.1} parent=1 // pred_check_branch
      %60 = sbr.rel (0) target = $region33
    $region32: #{tpu_custom_call.1} parent=1 // pred_region
      %61 = dma.done [#allocation8], 1024
    $region33: #{tpu_custom_call.1} parent=1 // pred_fallthru
      _
    %v63 = vld [vmem:[#allocation4] sm:$0xf]
    %v64 = vld [vmem:[#allocation4 + $0x4] sm:$0xf]
    %v65 = vld [vmem:[#allocation4 + $0x8] sm:$0xf]
    %v66 = vld [vmem:[#allocation4 + $0xc] sm:$0xf]
    %v67 = vld [vmem:[#allocation7] sm:$0xff]
    %v68 = vld [vmem:[#allocation7 + $0x8] sm:$0xf]
    %v69 = vld [vmem:[#allocation7 + $0xc] sm:$0xff]
    %v70 = vld [vmem:[#allocation7 + $0x14] sm:$0xf]
    %v71 = vld [vmem:[#allocation7 + $0x18] sm:$0xff]
    %v72 = vld [vmem:[#allocation7 + $0x20] sm:$0xf]
    %v73 = vld [vmem:[#allocation7 + $0x24] sm:$0xff]
    %v74 = vld [vmem:[#allocation7 + $0x2c] sm:$0xf]
    %v75 = vld [vmem:[#allocation7 + $0x30] sm:$0xff]
    %v76 = vld [vmem:[#allocation7 + $0x38] sm:$0xf]
    %v77 = vld [vmem:[#allocation7 + $0x3c] sm:$0xff]
    %v78 = vld [vmem:[#allocation7 + $0x44] sm:$0xf]
    %v79 = vld [vmem:[#allocation7 + $0x48] sm:$0xff]
    %v80 = vld [vmem:[#allocation7 + $0x50] sm:$0xf]
    %v81 = vld [vmem:[#allocation7 + $0x54] sm:$0xff]
    %v82 = vld [vmem:[#allocation7 + $0x5c] sm:$0xf]
    %v83 = vld [vmem:[#allocation7 + $0x60] sm:$0xff]
    %v84 = vld [vmem:[#allocation7 + $0x68] sm:$0xf]
    %v85 = vld [vmem:[#allocation7 + $0x6c] sm:$0xff]
    %v86 = vld [vmem:[#allocation7 + $0x74] sm:$0xf]
    %v87 = vld [vmem:[#allocation7 + $0x78] sm:$0xff]
    %v88 = vld [vmem:[#allocation7 + $0x80] sm:$0xf]
    %v89 = vld [vmem:[#allocation7 + $0x84] sm:$0xff]
    %v90 = vld [vmem:[#allocation7 + $0x8c] sm:$0xf]
    %v91 = vld [vmem:[#allocation7 + $0x90] sm:$0xff]
    %v92 = vld [vmem:[#allocation7 + $0x98] sm:$0xf]
    %v93 = vld [vmem:[#allocation7 + $0x9c] sm:$0xff]
    %v94 = vld [vmem:[#allocation7 + $0xa4] sm:$0xf]
    %v95 = vld [vmem:[#allocation7 + $0xa8] sm:$0xff]
    %v96 = vld [vmem:[#allocation7 + $0xb0] sm:$0xf]
    %v97 = vld [vmem:[#allocation7 + $0xb4] sm:$0xff]
    %v98 = vld [vmem:[#allocation7 + $0xbc] sm:$0xf]
    %v103 = vunpack.c.l.b16 %v63
    %v104 = vunpack.c.l.b16 %v64
    %v105 = vunpack.c.l.b16 %v65
    %v106 = vunpack.c.l.b16 %v66
    %v107 = vpack.c.b16 %v104, %v103
    %v108 = vpack.c.b16 %v106, %v105
    %v143 = vunpack.c.l.b16 %v67
    %v144 = vunpack.c.h.b16 %v67
    %v145 = vunpack.c.l.b16 %v68
    %v146 = vunpack.c.l.b16 %v69
    %v147 = vunpack.c.h.b16 %v69
    %v148 = vunpack.c.l.b16 %v70
    %v149 = vunpack.c.l.b16 %v71
    %v150 = vunpack.c.h.b16 %v71
    %v151 = vunpack.c.l.b16 %v72
    %v152 = vunpack.c.l.b16 %v73
    %v153 = vunpack.c.h.b16 %v73
    %v154 = vunpack.c.l.b16 %v74
    %v155 = vunpack.c.l.b16 %v75
    %v156 = vunpack.c.h.b16 %v75
    %v157 = vunpack.c.l.b16 %v76
    %v158 = vunpack.c.l.b16 %v77
    %v159 = vunpack.c.h.b16 %v77
    %v160 = vunpack.c.l.b16 %v78
    %v161 = vunpack.c.l.b16 %v79
    %v162 = vunpack.c.h.b16 %v79
    %v163 = vunpack.c.l.b16 %v80
    %v164 = vunpack.c.l.b16 %v81
    %v165 = vunpack.c.h.b16 %v81
    %v166 = vunpack.c.l.b16 %v82
    %v167 = vunpack.c.l.b16 %v83
    %v168 = vunpack.c.h.b16 %v83
    %v169 = vunpack.c.l.b16 %v84
    %v170 = vunpack.c.l.b16 %v85
    %v171 = vunpack.c.h.b16 %v85
    %v172 = vunpack.c.l.b16 %v86
    %v173 = vunpack.c.l.b16 %v87
    %v174 = vunpack.c.h.b16 %v87
    %v175 = vunpack.c.l.b16 %v88
    %v176 = vunpack.c.l.b16 %v89
    %v177 = vunpack.c.h.b16 %v89
    %v178 = vunpack.c.l.b16 %v90
    %v179 = vunpack.c.l.b16 %v91
    %v180 = vunpack.c.h.b16 %v91
    %v181 = vunpack.c.l.b16 %v92
    %v182 = vunpack.c.l.b16 %v93
    %v183 = vunpack.c.h.b16 %v93
    %v184 = vunpack.c.l.b16 %v94
    %v185 = vunpack.c.l.b16 %v95
    %v186 = vunpack.c.h.b16 %v95
    %v187 = vunpack.c.l.b16 %v96
    %v188 = vunpack.c.l.b16 %v97
    %v189 = vunpack.c.h.b16 %v97
    %v190 = vunpack.c.l.b16 %v98
    %v191 = vpack.c.b16 %v146, %v143
    %v192 = vpack.c.b16 %v147, %v144
    %v193 = vpack.c.b16 %v148, %v145
    %v194 = vpack.c.b16 %v152, %v149
    %v195 = vpack.c.b16 %v153, %v150
    %v196 = vpack.c.b16 %v154, %v151
    %v197 = vpack.c.b16 %v158, %v155
    %v198 = vpack.c.b16 %v159, %v156
    %v199 = vpack.c.b16 %v160, %v157
    %v200 = vpack.c.b16 %v164, %v161
    %v201 = vpack.c.b16 %v165, %v162
    %v202 = vpack.c.b16 %v166, %v163
    %v203 = vpack.c.b16 %v170, %v167
    %v204 = vpack.c.b16 %v171, %v168
    %v205 = vpack.c.b16 %v172, %v169
    %v206 = vpack.c.b16 %v176, %v173
    %v207 = vpack.c.b16 %v177, %v174
    %v208 = vpack.c.b16 %v178, %v175
    %v209 = vpack.c.b16 %v182, %v179
    %v210 = vpack.c.b16 %v183, %v180
    %v211 = vpack.c.b16 %v184, %v181
    %v212 = vpack.c.b16 %v188, %v185
    %v213 = vpack.c.b16 %v189, %v186
    %v214 = vpack.c.b16 %v190, %v187
    %239 = vmatprep.subr.bf16.mxu0 %v192
    %240 = vmatpush1.bf16.msra.mxu0 %v191
    %241 = vmatprep.subr.bf16.mxu0 %v195
    %242 = vmatpush1.bf16.msra.mxu0 %v194
    %243 = vmatprep.subr.bf16.mxu0 %v198
    %244 = vmatpush1.bf16.msra.mxu0 %v197
    %245 = vmatprep.subr.bf16.mxu0 %v201
    %246 = vmatpush1.bf16.msra.mxu0 %v200
    %247 = vmatprep.subr.bf16.mxu0 %v204
    %248 = vmatpush1.bf16.msra.mxu0 %v203
    %249 = vmatprep.subr.bf16.mxu0 %v207
    %250 = vmatpush1.bf16.msra.mxu0 %v206
    %251 = vmatprep.subr.bf16.mxu0 %v210
    %252 = vmatpush1.bf16.msra.mxu0 %v209
    %253 = vmatprep.subr.bf16.mxu0 %v213
    %254 = vmatpush1.bf16.msra.mxu0 %v212
    %255 = vmatprep.subr.bf16.mxu0 0
    %256 = vmatpush1.bf16.msra.mxu0 0
    %257 = vmatprep.subr.bf16.mxu0 0
    %258 = vmatpush1.bf16.msra.mxu0 0
    %259 = vmatprep.subr.bf16.mxu0 0
    %260 = vmatpush1.bf16.msra.mxu0 0
    %261 = vmatprep.subr.bf16.mxu0 0
    %262 = vmatpush1.bf16.msra.mxu0 0
    %263 = vmatprep.subr.bf16.mxu0 0
    %264 = vmatpush1.bf16.msra.mxu0 0
    %265 = vmatprep.subr.bf16.mxu0 0
    %266 = vmatpush1.bf16.msra.mxu0 0
    %267 = vmatprep.subr.bf16.mxu0 0
    %268 = vmatpush1.bf16.msra.mxu0 0
    %269 = vmatprep.subr.bf16.mxu0 0
    %270 = vmatpush1.bf16.msra.mxu0 0
    %271 = vmatprep.mubr.bf16.mxu0 0
    %272 = vmatmul.mubr.bf16.gmra.mrb[0].mxu0 %v107
    %v273 = vpop.f32.mrb[0].mxu0
    %v274 = vadd.f32 0.0, %v273
    %v275 = vpop.f32.mrb[0].mxu0
    %v276 = vadd.f32 0.0, %v275
    %v277 = vpop.f32.mrb[0].mxu0
    %v278 = vadd.f32 0.0, %v277
    %v279 = vpop.f32.mrb[0].mxu0
    %v280 = vadd.f32 0.0, %v279
    %281 = vmatprep.mubr.bf16.mxu0 0
    %282 = vmatmul.mubr.bf16.gmra.mrb[0].mxu0 %v108
    %v283 = vpop.f32.mrb[0].mxu0
    %v284 = vadd.f32 0.0, %v283
    %v285 = vpop.f32.mrb[0].mxu0
    %v286 = vadd.f32 0.0, %v285
    %v287 = vpop.f32.mrb[0].mxu0
    %v288 = vadd.f32 0.0, %v287
    %v289 = vpop.f32.mrb[0].mxu0
    %v290 = vadd.f32 0.0, %v289
    %291 = vdwg.mxu0
    %292 = vmatprep.subr.bf16.mxu0 0
    %293 = vmatpush1.bf16.msra.mxu0 %v193
    %294 = vmatprep.subr.bf16.mxu0 0
    %295 = vmatpush1.bf16.msra.mxu0 %v196
    %296 = vmatprep.subr.bf16.mxu0 0
    %297 = vmatpush1.bf16.msra.mxu0 %v199
    %298 = vmatprep.subr.bf16.mxu0 0
    %299 = vmatpush1.bf16.msra.mxu0 %v202
    %300 = vmatprep.subr.bf16.mxu0 0
    %301 = vmatpush1.bf16.msra.mxu0 %v205
    %302 = vmatprep.subr.bf16.mxu0 0
    %303 = vmatpush1.bf16.msra.mxu0 %v208
    %304 = vmatprep.subr.bf16.mxu0 0
    %305 = vmatpush1.bf16.msra.mxu0 %v211
    %306 = vmatprep.subr.bf16.mxu0 0
    %307 = vmatpush1.bf16.msra.mxu0 %v214
    %308 = vmatprep.subr.bf16.mxu0 0
    %309 = vmatpush1.bf16.msra.mxu0 0
    %310 = vmatprep.subr.bf16.mxu0 0
    %311 = vmatpush1.bf16.msra.mxu0 0
    %312 = vmatprep.subr.bf16.mxu0 0
    %313 = vmatpush1.bf16.msra.mxu0 0
    %314 = vmatprep.subr.bf16.mxu0 0
    %315 = vmatpush1.bf16.msra.mxu0 0
    %316 = vmatprep.subr.bf16.mxu0 0
    %317 = vmatpush1.bf16.msra.mxu0 0
    %318 = vmatprep.subr.bf16.mxu0 0
    %319 = vmatpush1.bf16.msra.mxu0 0
    %320 = vmatprep.subr.bf16.mxu0 0
    %321 = vmatpush1.bf16.msra.mxu0 0
    %322 = vmatprep.subr.bf16.mxu0 0
    %323 = vmatpush1.bf16.msra.mxu0 0
    %324 = vmatprep.mubr.bf16.mxu0 0
    %325 = vmatmul.mubr.bf16.gmra.mrb[0].mxu0 %v107
    %v326 = vpop.f32.mrb[0].mxu0
    %v327 = vadd.f32 0.0, %v326
    %v328 = vpop.f32.mrb[0].mxu0
    %v329 = vpop.f32.mrb[0].mxu0
    %v330 = vadd.f32 0.0, %v329
    %v331 = vpop.f32.mrb[0].mxu0
    %332 = vmatprep.mubr.bf16.mxu0 0
    %333 = vmatmul.mubr.bf16.gmra.mrb[0].mxu0 %v108
    %v334 = vpop.f32.mrb[0].mxu0
    %v335 = vadd.f32 0.0, %v334
    %v336 = vpop.f32.mrb[0].mxu0
    %v337 = vpop.f32.mrb[0].mxu0
    %v338 = vadd.f32 0.0, %v337
    %v339 = vpop.f32.mrb[0].mxu0
    %340 = vdwg.mxu0
    %v341 = vpack.c.bf16 %v278, %v274
    %v342 = vpack.c.bf16 %v280, %v276
    %v343 = vpack.c.bf16 %v330, %v327
    %v344 = vpack.c.bf16 %v288, %v284
    %v345 = vpack.c.bf16 %v290, %v286
    %v346 = vpack.c.bf16 %v338, %v335
    %347 = vst [vmem:[#allocation2] sm:$0xff] %v341
    %348 = vst [vmem:[#allocation2 + $0x8] sm:$0xff] %v342
    %349 = vst [vmem:[#allocation2 + $0x10] sm:$0xff] %v343
    %350 = vst [vmem:[#allocation2 + $0x18] sm:$0xff] %v344
    %351 = vst [vmem:[#allocation2 + $0x20] sm:$0xff] %v345
    %352 = vst [vmem:[#allocation2 + $0x28] sm:$0xff] %v346
    %v353 = vld [vmem:[%s4] sm:$0x1]
    loop: start=0, step=1, limit=2
    $region34: #{tpu_custom_call.1} parent=1 // loop_pre_header
      _
    $region35: #{tpu_custom_call.1} parent=1 // loop_header
      %s355 = sphi 0, %s359
      %p356 = scmp.ge.s32.totalorder %s355, 2
    $region36: #{tpu_custom_call.1} parent=1 // loop_header_branch
      %358 = sbr.rel (%p356) target = $region40
    $region37: #{tpu_custom_call.1} parent=1 // loop_body
      %s360 = smul.u32 %s355, 16
      %s361 = sshra.s32 %s360, 4
      %s362 = sand.u32 %s360, 15
      %s363 = smul.u32 %s361, 3
      %s364 = smul.addr %s363, 8
      %s365 = scalar_lea.vmem [#allocation2], %s364
      %v366 = vld [vmem:[%s365] sm:$0xff]
      %v367 = vld [vmem:[%s365 + $0x8] sm:$0xff]
      %v368 = vld [vmem:[%s365 + $0x10] sm:$0xff]
      %v370 = vlaneseq
      %v371 = vshrl.u32 %v370, 7
      %v372 = vsub.s32 0, %v371
      %v373 = vrot.slane %v353, %v372
      %vm375 = vcmask 261120
      %v377 = vsel %vm375, %v366, 0
      %v380 = vsel %vm375, %v367, 0
      %382 = vmatprep.subr.bf16.mxu0 0
      %383 = vmatpush1.bf16.xpose.msra.mxu0 %v380
      %384 = vmatprep.subr.bf16.mxu0 0
      %385 = vmatpush1.bf16.xpose.msra.mxu0 0
      %386 = vmatprep.subr.bf16.mxu0 0
      %387 = vmatpush1.bf16.xpose.msra.mxu0 0
      %388 = vmatprep.subr.bf16.mxu0 0
      %389 = vmatpush1.bf16.xpose.msra.mxu0 0
      %390 = vmatprep.subr.bf16.mxu0 0
      %391 = vmatpush1.bf16.xpose.msra.mxu0 0
      %392 = vmatprep.subr.bf16.mxu0 0
      %393 = vmatpush1.bf16.xpose.msra.mxu0 0
      %394 = vmatprep.subr.bf16.mxu0 0
      %395 = vmatpush1.bf16.xpose.msra.mxu0 0
      %396 = vmatprep.subr.bf16.mxu0 0
      %397 = vmatpush1.bf16.xpose.msra.mxu0 0
      %398 = vmatprep.subr.bf16.mxu0 0
      %399 = vmatpush1.bf16.xpose.msra.mxu0 0
      %400 = vmatprep.subr.bf16.mxu0 0
      %401 = vmatpush1.bf16.xpose.msra.mxu0 0
      %402 = vmatprep.subr.bf16.mxu0 0
      %403 = vmatpush1.bf16.xpose.msra.mxu0 0
      %404 = vmatprep.subr.bf16.mxu0 0
      %405 = vmatpush1.bf16.xpose.msra.mxu0 0
      %406 = vmatprep.subr.bf16.mxu0 0
      %407 = vmatpush1.bf16.xpose.msra.mxu0 0
      %408 = vmatprep.subr.bf16.mxu0 0
      %409 = vmatpush1.bf16.xpose.msra.mxu0 0
      %410 = vmatprep.subr.bf16.mxu0 0
      %411 = vmatpush1.bf16.xpose.msra.mxu0 0
      %412 = vmatprep.subr.bf16.mxu0 0
      %413 = vmatpush1.bf16.xpose.msra.mxu0 0
      %414 = vmatprep.mubr.bf16.mxu0 0
      %415 = vmatmul.mubr.bf16.gmra.mrb[0].mxu0 %v377
      %v416 = vpop.f32.mrb[0].mxu0
      %v417 = vadd.f32 %v373, %v416
      %v418 = vpop.f32.mrb[0].mxu0
      %v419 = vpop.f32.mrb[0].mxu0
      %v420 = vadd.f32 %v373, %v419
      %v421 = vpop.f32.mrb[0].mxu0
      %422 = vdwg.mxu0
      %vm423 = vcmask 130048
      %v424 = vsel %vm423, %v417, -inf
      %425 = vmax.xlane.f32.xlu0 %v424
      %v426 = vpop.xlane.xlu0 %425
      %v427 = vsel %vm423, %v420, -inf
      %428 = vmax.xlane.f32.xlu0 %v427
      %v429 = vpop.xlane.xlu0 %428
      %v430 = vsub.f32 %v417, %v426
      %v431 = vsub.f32 %v420, %v429
      %v432 = vmul.f32 %v430, 1.442695
      %v433 = vpow.pop %v432
      %v434 = vmul.f32 %v431, 1.442695
      %v435 = vpow.pop %v434
      %v436 = vsel %vm423, %v433, 0.0
      %437 = vadd.xlane.f32.xlu0 %v436
      %v438 = vpop.xlane.xlu0 %437
      %v439 = vsel %vm423, %v435, 0.0
      %440 = vadd.xlane.f32.xlu0 %v439
      %v441 = vpop.xlane.xlu0 %440
      %v442 = vrcp.pop %v438
      %v443 = vrcp.pop %v441
      %v444 = vmul.f32 %v433, %v442
      %v445 = vmul.f32 %v435, %v443
      %v446 = vpack.c.bf16 %v445, %v444
      %v448 = vsel %vm423, %v446, 0
      %450 = vmatprep.subr.bf16.mxu0 0
      %451 = vmatpush1.bf16.msra.mxu0 %v368
      %452 = vmatprep.subr.bf16.mxu0 0
      %453 = vmatpush1.bf16.msra.mxu0 0
      %454 = vmatprep.subr.bf16.mxu0 0
      %455 = vmatpush1.bf16.msra.mxu0 0
      %456 = vmatprep.subr.bf16.mxu0 0
      %457 = vmatpush1.bf16.msra.mxu0 0
      %458 = vmatprep.subr.bf16.mxu0 0
      %459 = vmatpush1.bf16.msra.mxu0 0
      %460 = vmatprep.subr.bf16.mxu0 0
      %461 = vmatpush1.bf16.msra.mxu0 0
      %462 = vmatprep.subr.bf16.mxu0 0
      %463 = vmatpush1.bf16.msra.mxu0 0
      %464 = vmatprep.subr.bf16.mxu0 0
      %465 = vmatpush1.bf16.msra.mxu0 0
      %466 = vmatprep.subr.bf16.mxu0 0
      %467 = vmatpush1.bf16.msra.mxu0 0
      %468 = vmatprep.subr.bf16.mxu0 0
      %469 = vmatpush1.bf16.msra.mxu0 0
      %470 = vmatprep.subr.bf16.mxu0 0
      %471 = vmatpush1.bf16.msra.mxu0 0
      %472 = vmatprep.subr.bf16.mxu0 0
      %473 = vmatpush1.bf16.msra.mxu0 0
      %474 = vmatprep.subr.bf16.mxu0 0
      %475 = vmatpush1.bf16.msra.mxu0 0
      %476 = vmatprep.subr.bf16.mxu0 0
      %477 = vmatpush1.bf16.msra.mxu0 0
      %478 = vmatprep.subr.bf16.mxu0 0
      %479 = vmatpush1.bf16.msra.mxu0 0
      %480 = vmatprep.subr.bf16.mxu0 0
      %481 = vmatpush1.bf16.msra.mxu0 0
      %482 = vmatprep.mubr.bf16.mxu0 0
      %483 = vmatmul.mubr.bf16.gmra.mrb[0].mxu0 %v448
      %v484 = vpop.f32.mrb[0].mxu0
      %v485 = vadd.f32 0.0, %v484
      %v486 = vpop.f32.mrb[0].mxu0
      %v487 = vpop.f32.mrb[0].mxu0
      %v488 = vadd.f32 0.0, %v487
      %v489 = vpop.f32.mrb[0].mxu0
      %490 = vdwg.mxu0
      %s491 = scalar_lea.vmem [#allocation3], %s360
      %492 = vst.msk [vmem:[%s491] sm:$0xff] %vm375, %v485
      %493 = vst.msk [vmem:[%s491 + $0x8] sm:$0xff] %vm375, %v488
      %v494 = vld [vmem:[%s365] sm:$0xff]
      %v495 = vld [vmem:[%s365 + $0x8] sm:$0xff]
      %v496 = vld [vmem:[%s365 + $0x10] sm:$0xff]
      %498 = vrot.lane.b32.xlu0 %v494, 96
      %v499 = vpop.permute.xlu0 %498
      %501 = vrot.lane.b32.xlu0 %v495, 96
      %v502 = vpop.permute.xlu0 %501
      %v504 = vsel %vm375, %v499, 0
      %v507 = vsel %vm375, %v502, 0
      %509 = vmatprep.subr.bf16.mxu0 0
      %510 = vmatpush1.bf16.xpose.msra.mxu0 %v507
      %511 = vmatprep.subr.bf16.mxu0 0
      %512 = vmatpush1.bf16.xpose.msra.mxu0 0
      %513 = vmatprep.subr.bf16.mxu0 0
      %514 = vmatpush1.bf16.xpose.msra.mxu0 0
      %515 = vmatprep.subr.bf16.mxu0 0
      %516 = vmatpush1.bf16.xpose.msra.mxu0 0
      %517 = vmatprep.subr.bf16.mxu0 0
      %518 = vmatpush1.bf16.xpose.msra.mxu0 0
      %519 = vmatprep.subr.bf16.mxu0 0
      %520 = vmatpush1.bf16.xpose.msra.mxu0 0
      %521 = vmatprep.subr.bf16.mxu0 0
      %522 = vmatpush1.bf16.xpose.msra.mxu0 0
      %523 = vmatprep.subr.bf16.mxu0 0
      %524 = vmatpush1.bf16.xpose.msra.mxu0 0
      %525 = vmatprep.subr.bf16.mxu0 0
      %526 = vmatpush1.bf16.xpose.msra.mxu0 0
      %527 = vmatprep.subr.bf16.mxu0 0
      %528 = vmatpush1.bf16.xpose.msra.mxu0 0
      %529 = vmatprep.subr.bf16.mxu0 0
      %530 = vmatpush1.bf16.xpose.msra.mxu0 0
      %531 = vmatprep.subr.bf16.mxu0 0
      %532 = vmatpush1.bf16.xpose.msra.mxu0 0
      %533 = vmatprep.subr.bf16.mxu0 0
      %534 = vmatpush1.bf16.xpose.msra.mxu0 0
      %535 = vmatprep.subr.bf16.mxu0 0
      %536 = vmatpush1.bf16.xpose.msra.mxu0 0
      %537 = vmatprep.subr.bf16.mxu0 0
      %538 = vmatpush1.bf16.xpose.msra.mxu0 0
      %539 = vmatprep.subr.bf16.mxu0 0
      %540 = vmatpush1.bf16.xpose.msra.mxu0 0
      %541 = vmatprep.mubr.bf16.mxu0 0
      %542 = vmatmul.mubr.bf16.gmra.mrb[0].mxu0 %v504
      %v543 = vpop.f32.mrb[0].mxu0
      %v544 = vadd.f32 %v373, %v543
      %v545 = vpop.f32.mrb[0].mxu0
      %v546 = vpop.f32.mrb[0].mxu0
      %v547 = vadd.f32 %v373, %v546
      %v548 = vpop.f32.mrb[0].mxu0
      %549 = vdwg.mxu0
      %v550 = vsel %vm423, %v544, -inf
      %551 = vmax.xlane.f32.xlu0 %v550
      %v552 = vpop.xlane.xlu0 %551
      %v553 = vsel %vm423, %v547, -inf
      %554 = vmax.xlane.f32.xlu0 %v553
      %v555 = vpop.xlane.xlu0 %554
      %v556 = vsub.f32 %v544, %v552
      %v557 = vsub.f32 %v547, %v555
      %v558 = vmul.f32 %v556, 1.442695
      %v559 = vpow.pop %v558
      %v560 = vmul.f32 %v557, 1.442695
      %v561 = vpow.pop %v560
      %v562 = vsel %vm423, %v559, 0.0
      %563 = vadd.xlane.f32.xlu0 %v562
      %v564 = vpop.xlane.xlu0 %563
      %v565 = vsel %vm423, %v561, 0.0
      %566 = vadd.xlane.f32.xlu0 %v565
      %v567 = vpop.xlane.xlu0 %566
      %v568 = vrcp.pop %v564
      %v569 = vrcp.pop %v567
      %v570 = vmul.f32 %v559, %v568
      %v571 = vmul.f32 %v561, %v569
      %v572 = vpack.c.bf16 %v571, %v570
      %574 = vrot.lane.b32.xlu0 %v496, 96
      %v575 = vpop.permute.xlu0 %574
      %v578 = vsel %vm423, %v572, 0
      %580 = vmatprep.subr.bf16.mxu0 0
      %581 = vmatpush1.bf16.msra.mxu0 %v575
      %582 = vmatprep.subr.bf16.mxu0 0
      %583 = vmatpush1.bf16.msra.mxu0 0
      %584 = vmatprep.subr.bf16.mxu0 0
      %585 = vmatpush1.bf16.msra.mxu0 0
      %586 = vmatprep.subr.bf16.mxu0 0
      %587 = vmatpush1.bf16.msra.mxu0 0
      %588 = vmatprep.subr.bf16.mxu0 0
      %589 = vmatpush1.bf16.msra.mxu0 0
      %590 = vmatprep.subr.bf16.mxu0 0
      %591 = vmatpush1.bf16.msra.mxu0 0
      %592 = vmatprep.subr.bf16.mxu0 0
      %593 = vmatpush1.bf16.msra.mxu0 0
      %594 = vmatprep.subr.bf16.mxu0 0
      %595 = vmatpush1.bf16.msra.mxu0 0
      %596 = vmatprep.subr.bf16.mxu0 0
      %597 = vmatpush1.bf16.msra.mxu0 0
      %598 = vmatprep.subr.bf16.mxu0 0
      %599 = vmatpush1.bf16.msra.mxu0 0
      %600 = vmatprep.subr.bf16.mxu0 0
      %601 = vmatpush1.bf16.msra.mxu0 0
      %602 = vmatprep.subr.bf16.mxu0 0
      %603 = vmatpush1.bf16.msra.mxu0 0
      %604 = vmatprep.subr.bf16.mxu0 0
      %605 = vmatpush1.bf16.msra.mxu0 0
      %606 = vmatprep.subr.bf16.mxu0 0
      %607 = vmatpush1.bf16.msra.mxu0 0
      %608 = vmatprep.subr.bf16.mxu0 0
      %609 = vmatpush1.bf16.msra.mxu0 0
      %610 = vmatprep.subr.bf16.mxu0 0
      %611 = vmatpush1.bf16.msra.mxu0 0
      %612 = vmatprep.mubr.bf16.mxu0 0
      %613 = vmatmul.mubr.bf16.gmra.mrb[0].mxu0 %v578
      %v614 = vpop.f32.mrb[0].mxu0
      %v615 = vadd.f32 0.0, %v614
      %v616 = vpop.f32.mrb[0].mxu0
      %v617 = vpop.f32.mrb[0].mxu0
      %v618 = vadd.f32 0.0, %v617
      %v619 = vpop.f32.mrb[0].mxu0
      %620 = vdwg.mxu0
      %623 = vrot.lane.b32.xlu0 %v615, 32
      %v624 = vpop.permute.xlu0 %623
      %625 = vrot.lane.b32.xlu0 %v618, 32
      %v626 = vpop.permute.xlu0 %625
      %vm629 = vcmask 523520
      %630 = vst.msk [vmem:[%s491] sm:$0xff] %vm629, %v624
      %631 = vst.msk [vmem:[%s491 + $0x8] sm:$0xff] %vm629, %v626
      %v632 = vld [vmem:[%s365] sm:$0xff]
      %v633 = vld [vmem:[%s365 + $0x8] sm:$0xff]
      %v634 = vld [vmem:[%s365 + $0x10] sm:$0xff]
      %636 = vrot.lane.b32.xlu0 %v632, 64
      %v637 = vpop.permute.xlu0 %636
      %639 = vrot.lane.b32.xlu0 %v633, 64
      %v640 = vpop.permute.xlu0 %639
      %v642 = vsel %vm375, %v637, 0
      %v645 = vsel %vm375, %v640, 0
      %647 = vmatprep.subr.bf16.mxu0 0
      %648 = vmatpush1.bf16.xpose.msra.mxu0 %v645
      %649 = vmatprep.subr.bf16.mxu0 0
      %650 = vmatpush1.bf16.xpose.msra.mxu0 0
      %651 = vmatprep.subr.bf16.mxu0 0
      %652 = vmatpush1.bf16.xpose.msra.mxu0 0
      %653 = vmatprep.subr.bf16.mxu0 0
      %654 = vmatpush1.bf16.xpose.msra.mxu0 0
      %655 = vmatprep.subr.bf16.mxu0 0
      %656 = vmatpush1.bf16.xpose.msra.mxu0 0
      %657 = vmatprep.subr.bf16.mxu0 0
      %658 = vmatpush1.bf16.xpose.msra.mxu0 0
      %659 = vmatprep.subr.bf16.mxu0 0
      %660 = vmatpush1.bf16.xpose.msra.mxu0 0
      %661 = vmatprep.subr.bf16.mxu0 0
      %662 = vmatpush1.bf16.xpose.msra.mxu0 0
      %663 = vmatprep.subr.bf16.mxu0 0
      %664 = vmatpush1.bf16.xpose.msra.mxu0 0
      %665 = vmatprep.subr.bf16.mxu0 0
      %666 = vmatpush1.bf16.xpose.msra.mxu0 0
      %667 = vmatprep.subr.bf16.mxu0 0
      %668 = vmatpush1.bf16.xpose.msra.mxu0 0
      %669 = vmatprep.subr.bf16.mxu0 0
      %670 = vmatpush1.bf16.xpose.msra.mxu0 0
      %671 = vmatprep.subr.bf16.mxu0 0
      %672 = vmatpush1.bf16.xpose.msra.mxu0 0
      %673 = vmatprep.subr.bf16.mxu0 0
      %674 = vmatpush1.bf16.xpose.msra.mxu0 0
      %675 = vmatprep.subr.bf16.mxu0 0
      %676 = vmatpush1.bf16.xpose.msra.mxu0 0
      %677 = vmatprep.subr.bf16.mxu0 0
      %678 = vmatpush1.bf16.xpose.msra.mxu0 0
      %679 = vmatprep.mubr.bf16.mxu0 0
      %680 = vmatmul.mubr.bf16.gmra.mrb[0].mxu0 %v642
      %v681 = vpop.f32.mrb[0].mxu0
      %v682 = vadd.f32 %v373, %v681
      %v683 = vpop.f32.mrb[0].mxu0
      %v684 = vpop.f32.mrb[0].mxu0
      %v685 = vadd.f32 %v373, %v684
      %v686 = vpop.f32.mrb[0].mxu0
      %687 = vdwg.mxu0
      %v688 = vsel %vm423, %v682, -inf
      %689 = vmax.xlane.f32.xlu0 %v688
      %v690 = vpop.xlane.xlu0 %689
      %v691 = vsel %vm423, %v685, -inf
      %692 = vmax.xlane.f32.xlu0 %v691
      %v693 = vpop.xlane.xlu0 %692
      %v694 = vsub.f32 %v682, %v690
      %v695 = vsub.f32 %v685, %v693
      %v696 = vmul.f32 %v694, 1.442695
      %v697 = vpow.pop %v696
      %v698 = vmul.f32 %v695, 1.442695
      %v699 = vpow.pop %v698
      %v700 = vsel %vm423, %v697, 0.0
      %701 = vadd.xlane.f32.xlu0 %v700
      %v702 = vpop.xlane.xlu0 %701
      %v703 = vsel %vm423, %v699, 0.0
      %704 = vadd.xlane.f32.xlu0 %v703
      %v705 = vpop.xlane.xlu0 %704
      %v706 = vrcp.pop %v702
      %v707 = vrcp.pop %v705
      %v708 = vmul.f32 %v697, %v706
      %v709 = vmul.f32 %v699, %v707
      %v710 = vpack.c.bf16 %v709, %v708
      %712 = vrot.lane.b32.xlu0 %v634, 64
      %v713 = vpop.permute.xlu0 %712
      %v716 = vsel %vm423, %v710, 0
      %718 = vmatprep.subr.bf16.mxu0 0
      %719 = vmatpush1.bf16.msra.mxu0 %v713
      %720 = vmatprep.subr.bf16.mxu0 0
      %721 = vmatpush1.bf16.msra.mxu0 0
      %722 = vmatprep.subr.bf16.mxu0 0
      %723 = vmatpush1.bf16.msra.mxu0 0
      %724 = vmatprep.subr.bf16.mxu0 0
      %725 = vmatpush1.bf16.msra.mxu0 0
      %726 = vmatprep.subr.bf16.mxu0 0
      %727 = vmatpush1.bf16.msra.mxu0 0
      %728 = vmatprep.subr.bf16.mxu0 0
      %729 = vmatpush1.bf16.msra.mxu0 0
      %730 = vmatprep.subr.bf16.mxu0 0
      %731 = vmatpush1.bf16.msra.mxu0 0
      %732 = vmatprep.subr.bf16.mxu0 0
      %733 = vmatpush1.bf16.msra.mxu0 0
      %734 = vmatprep.subr.bf16.mxu0 0
      %735 = vmatpush1.bf16.msra.mxu0 0
      %736 = vmatprep.subr.bf16.mxu0 0
      %737 = vmatpush1.bf16.msra.mxu0 0
      %738 = vmatprep.subr.bf16.mxu0 0
      %739 = vmatpush1.bf16.msra.mxu0 0
      %740 = vmatprep.subr.bf16.mxu0 0
      %741 = vmatpush1.bf16.msra.mxu0 0
      %742 = vmatprep.subr.bf16.mxu0 0
      %743 = vmatpush1.bf16.msra.mxu0 0
      %744 = vmatprep.subr.bf16.mxu0 0
      %745 = vmatpush1.bf16.msra.mxu0 0
      %746 = vmatprep.subr.bf16.mxu0 0
      %747 = vmatpush1.bf16.msra.mxu0 0
      %748 = vmatprep.subr.bf16.mxu0 0
      %749 = vmatpush1.bf16.msra.mxu0 0
      %750 = vmatprep.mubr.bf16.mxu0 0
      %751 = vmatmul.mubr.bf16.gmra.mrb[0].mxu0 %v716
      %v752 = vpop.f32.mrb[0].mxu0
      %v753 = vadd.f32 0.0, %v752
      %v754 = vpop.f32.mrb[0].mxu0
      %v755 = vpop.f32.mrb[0].mxu0
      %v756 = vadd.f32 0.0, %v755
      %v757 = vpop.f32.mrb[0].mxu0
      %758 = vdwg.mxu0
      %761 = vrot.lane.b32.xlu0 %v753, 64
      %v762 = vpop.permute.xlu0 %761
      %763 = vrot.lane.b32.xlu0 %v756, 64
      %v764 = vpop.permute.xlu0 %763
      %vm767 = vcmask 785920
      %768 = vst.msk [vmem:[%s491] sm:$0xff] %vm767, %v762
      %769 = vst.msk [vmem:[%s491 + $0x8] sm:$0xff] %vm767, %v764
      %v770 = vld [vmem:[%s365] sm:$0xff]
      %v771 = vld [vmem:[%s365 + $0x8] sm:$0xff]
      %v772 = vld [vmem:[%s365 + $0x10] sm:$0xff]
      %774 = vrot.lane.b32.xlu0 %v770, 32
      %v775 = vpop.permute.xlu0 %774
      %777 = vrot.lane.b32.xlu0 %v771, 32
      %v778 = vpop.permute.xlu0 %777
      %v780 = vsel %vm375, %v775, 0
      %v783 = vsel %vm375, %v778, 0
      %785 = vmatprep.subr.bf16.mxu0 0
      %786 = vmatpush1.bf16.xpose.msra.mxu0 %v783
      %787 = vmatprep.subr.bf16.mxu0 0
      %788 = vmatpush1.bf16.xpose.msra.mxu0 0
      %789 = vmatprep.subr.bf16.mxu0 0
      %790 = vmatpush1.bf16.xpose.msra.mxu0 0
      %791 = vmatprep.subr.bf16.mxu0 0
      %792 = vmatpush1.bf16.xpose.msra.mxu0 0
      %793 = vmatprep.subr.bf16.mxu0 0
      %794 = vmatpush1.bf16.xpose.msra.mxu0 0
      %795 = vmatprep.subr.bf16.mxu0 0
      %796 = vmatpush1.bf16.xpose.msra.mxu0 0
      %797 = vmatprep.subr.bf16.mxu0 0
      %798 = vmatpush1.bf16.xpose.msra.mxu0 0
      %799 = vmatprep.subr.bf16.mxu0 0
      %800 = vmatpush1.bf16.xpose.msra.mxu0 0
      %801 = vmatprep.subr.bf16.mxu0 0
      %802 = vmatpush1.bf16.xpose.msra.mxu0 0
      %803 = vmatprep.subr.bf16.mxu0 0
      %804 = vmatpush1.bf16.xpose.msra.mxu0 0
      %805 = vmatprep.subr.bf16.mxu0 0
      %806 = vmatpush1.bf16.xpose.msra.mxu0 0
      %807 = vmatprep.subr.bf16.mxu0 0
      %808 = vmatpush1.bf16.xpose.msra.mxu0 0
      %809 = vmatprep.subr.bf16.mxu0 0
      %810 = vmatpush1.bf16.xpose.msra.mxu0 0
      %811 = vmatprep.subr.bf16.mxu0 0
      %812 = vmatpush1.bf16.xpose.msra.mxu0 0
      %813 = vmatprep.subr.bf16.mxu0 0
      %814 = vmatpush1.bf16.xpose.msra.mxu0 0
      %815 = vmatprep.subr.bf16.mxu0 0
      %816 = vmatpush1.bf16.xpose.msra.mxu0 0
      %817 = vmatprep.mubr.bf16.mxu0 0
      %818 = vmatmul.mubr.bf16.gmra.mrb[0].mxu0 %v780
      %v819 = vpop.f32.mrb[0].mxu0
      %v820 = vadd.f32 %v373, %v819
      %v821 = vpop.f32.mrb[0].mxu0
      %v822 = vpop.f32.mrb[0].mxu0
      %v823 = vadd.f32 %v373, %v822
      %v824 = vpop.f32.mrb[0].mxu0
      %825 = vdwg.mxu0
      %v826 = vsel %vm423, %v820, -inf
      %827 = vmax.xlane.f32.xlu0 %v826
      %v828 = vpop.xlane.xlu0 %827
      %v829 = vsel %vm423, %v823, -inf
      %830 = vmax.xlane.f32.xlu0 %v829
      %v831 = vpop.xlane.xlu0 %830
      %v832 = vsub.f32 %v820, %v828
      %v833 = vsub.f32 %v823, %v831
      %v834 = vmul.f32 %v832, 1.442695
      %v835 = vpow.pop %v834
      %v836 = vmul.f32 %v833, 1.442695
      %v837 = vpow.pop %v836
      %v838 = vsel %vm423, %v835, 0.0
      %839 = vadd.xlane.f32.xlu0 %v838
      %v840 = vpop.xlane.xlu0 %839
      %v841 = vsel %vm423, %v837, 0.0
      %842 = vadd.xlane.f32.xlu0 %v841
      %v843 = vpop.xlane.xlu0 %842
      %v844 = vrcp.pop %v840
      %v845 = vrcp.pop %v843
      %v846 = vmul.f32 %v835, %v844
      %v847 = vmul.f32 %v837, %v845
      %v848 = vpack.c.bf16 %v847, %v846
      %850 = vrot.lane.b32.xlu0 %v772, 32
      %v851 = vpop.permute.xlu0 %850
      %v854 = vsel %vm423, %v848, 0
      %856 = vmatprep.subr.bf16.mxu0 0
      %857 = vmatpush1.bf16.msra.mxu0 %v851
      %858 = vmatprep.subr.bf16.mxu0 0
      %859 = vmatpush1.bf16.msra.mxu0 0
      %860 = vmatprep.subr.bf16.mxu0 0
      %861 = vmatpush1.bf16.msra.mxu0 0
      %862 = vmatprep.subr.bf16.mxu0 0
      %863 = vmatpush1.bf16.msra.mxu0 0
      %864 = vmatprep.subr.bf16.mxu0 0
      %865 = vmatpush1.bf16.msra.mxu0 0
      %866 = vmatprep.subr.bf16.mxu0 0
      %867 = vmatpush1.bf16.msra.mxu0 0
      %868 = vmatprep.subr.bf16.mxu0 0
      %869 = vmatpush1.bf16.msra.mxu0 0
      %870 = vmatprep.subr.bf16.mxu0 0
      %871 = vmatpush1.bf16.msra.mxu0 0
      %872 = vmatprep.subr.bf16.mxu0 0
      %873 = vmatpush1.bf16.msra.mxu0 0
      %874 = vmatprep.subr.bf16.mxu0 0
      %875 = vmatpush1.bf16.msra.mxu0 0
      %876 = vmatprep.subr.bf16.mxu0 0
      %877 = vmatpush1.bf16.msra.mxu0 0
      %878 = vmatprep.subr.bf16.mxu0 0
      %879 = vmatpush1.bf16.msra.mxu0 0
      %880 = vmatprep.subr.bf16.mxu0 0
      %881 = vmatpush1.bf16.msra.mxu0 0
      %882 = vmatprep.subr.bf16.mxu0 0
      %883 = vmatpush1.bf16.msra.mxu0 0
      %884 = vmatprep.subr.bf16.mxu0 0
      %885 = vmatpush1.bf16.msra.mxu0 0
      %886 = vmatprep.subr.bf16.mxu0 0
      %887 = vmatpush1.bf16.msra.mxu0 0
      %888 = vmatprep.mubr.bf16.mxu0 0
      %889 = vmatmul.mubr.bf16.gmra.mrb[0].mxu0 %v854
      %v890 = vpop.f32.mrb[0].mxu0
      %v891 = vadd.f32 0.0, %v890
      %v892 = vpop.f32.mrb[0].mxu0
      %v893 = vpop.f32.mrb[0].mxu0
      %v894 = vadd.f32 0.0, %v893
      %v895 = vpop.f32.mrb[0].mxu0
      %896 = vdwg.mxu0
      %899 = vrot.lane.b32.xlu0 %v891, 96
      %v900 = vpop.permute.xlu0 %899
      %901 = vrot.lane.b32.xlu0 %v894, 96
      %v902 = vpop.permute.xlu0 %901
      %vm905 = vcmask 1048320
      %906 = vst.msk [vmem:[%s491] sm:$0xff] %vm905, %v900
      %907 = vst.msk [vmem:[%s491 + $0x8] sm:$0xff] %vm905, %v902
    $region38: #{tpu_custom_call.1} parent=1 // loop_footer
      %s359 = sadd.s32 1, %s355
    $region39: #{tpu_custom_call.1} parent=1 // loop_footer_branch
      %354 = sbr.rel target = $region35
    $region40: #{tpu_custom_call.1} parent=1 // loop_exit
      _
    %v908 = vld [vmem:[#allocation3] sm:$0xff]
    %v909 = vld [vmem:[#allocation3 + $0x8] sm:$0xff]
    %v910 = vld [vmem:[#allocation3 + $0x10] sm:$0xff]
    %v911 = vld [vmem:[#allocation3 + $0x18] sm:$0xff]
    %v912 = vpack.c.bf16 %v909, %v908
    %v913 = vpack.c.bf16 %v911, %v910
    %v914 = vld [vmem:[#allocation9] sm:$0xf]
    %v915 = vld [vmem:[#allocation9 + $0x4] sm:$0xf]
    %v916 = vld [vmem:[#allocation9 + $0x8] sm:$0xf]
    %v917 = vld [vmem:[#allocation9 + $0xc] sm:$0xf]
    %v918 = vld [vmem:[#allocation9 + $0x10] sm:$0xf]
    %v919 = vld [vmem:[#allocation9 + $0x14] sm:$0xf]
    %v920 = vld [vmem:[#allocation9 + $0x18] sm:$0xf]
    %v921 = vld [vmem:[#allocation9 + $0x1c] sm:$0xf]
    %v922 = vld [vmem:[#allocation9 + $0x20] sm:$0xf]
    %v923 = vld [vmem:[#allocation9 + $0x24] sm:$0xf]
    %v924 = vld [vmem:[#allocation9 + $0x28] sm:$0xf]
    %v925 = vld [vmem:[#allocation9 + $0x2c] sm:$0xf]
    %v926 = vld [vmem:[#allocation9 + $0x30] sm:$0xf]
    %v927 = vld [vmem:[#allocation9 + $0x34] sm:$0xf]
    %v928 = vld [vmem:[#allocation9 + $0x38] sm:$0xf]
    %v929 = vld [vmem:[#allocation9 + $0x3c] sm:$0xf]
    %v930 = vld [vmem:[%s3] sm:$0x1]
    %v932 = vlaneseq
    %v933 = vshrl.u32 %v932, 7
    %v934 = vsub.s32 0, %v933
    %v935 = vrot.slane %v930, %v934
    %v953 = vunpack.c.l.b16 %v914
    %v954 = vunpack.c.l.b16 %v915
    %v955 = vunpack.c.l.b16 %v916
    %v956 = vunpack.c.l.b16 %v917
    %v957 = vunpack.c.l.b16 %v918
    %v958 = vunpack.c.l.b16 %v919
    %v959 = vunpack.c.l.b16 %v920
    %v960 = vunpack.c.l.b16 %v921
    %v961 = vunpack.c.l.b16 %v922
    %v962 = vunpack.c.l.b16 %v923
    %v963 = vunpack.c.l.b16 %v924
    %v964 = vunpack.c.l.b16 %v925
    %v965 = vunpack.c.l.b16 %v926
    %v966 = vunpack.c.l.b16 %v927
    %v967 = vunpack.c.l.b16 %v928
    %v968 = vunpack.c.l.b16 %v929
    %v969 = vpack.c.b16 %v954, %v953
    %v970 = vpack.c.b16 %v956, %v955
    %v971 = vpack.c.b16 %v958, %v957
    %v972 = vpack.c.b16 %v960, %v959
    %v973 = vpack.c.b16 %v962, %v961
    %v974 = vpack.c.b16 %v964, %v963
    %v975 = vpack.c.b16 %v966, %v965
    %v976 = vpack.c.b16 %v968, %v967
    %985 = vmatprep.subr.bf16.mxu0 0
    %986 = vmatpush1.bf16.msra.mxu0 %v969
    %987 = vmatprep.subr.bf16.mxu0 0
    %988 = vmatpush1.bf16.msra.mxu0 %v970
    %989 = vmatprep.subr.bf16.mxu0 0
    %990 = vmatpush1.bf16.msra.mxu0 %v971
    %991 = vmatprep.subr.bf16.mxu0 0
    %992 = vmatpush1.bf16.msra.mxu0 %v972
    %993 = vmatprep.subr.bf16.mxu0 0
    %994 = vmatpush1.bf16.msra.mxu0 %v973
    %995 = vmatprep.subr.bf16.mxu0 0
    %996 = vmatpush1.bf16.msra.mxu0 %v974
    %997 = vmatprep.subr.bf16.mxu0 0
    %998 = vmatpush1.bf16.msra.mxu0 %v975
    %999 = vmatprep.subr.bf16.mxu0 0
    %1000 = vmatpush1.bf16.msra.mxu0 %v976
    %1001 = vmatprep.subr.bf16.mxu0 0
    %1002 = vmatpush1.bf16.msra.mxu0 0
    %1003 = vmatprep.subr.bf16.mxu0 0
    %1004 = vmatpush1.bf16.msra.mxu0 0
    %1005 = vmatprep.subr.bf16.mxu0 0
    %1006 = vmatpush1.bf16.msra.mxu0 0
    %1007 = vmatprep.subr.bf16.mxu0 0
    %1008 = vmatpush1.bf16.msra.mxu0 0
    %1009 = vmatprep.subr.bf16.mxu0 0
    %1010 = vmatpush1.bf16.msra.mxu0 0
    %1011 = vmatprep.subr.bf16.mxu0 0
    %1012 = vmatpush1.bf16.msra.mxu0 0
    %1013 = vmatprep.subr.bf16.mxu0 0
    %1014 = vmatpush1.bf16.msra.mxu0 0
    %1015 = vmatprep.subr.bf16.mxu0 0
    %1016 = vmatpush1.bf16.msra.mxu0 0
    %1017 = vmatprep.mubr.bf16.mxu0 0
    %1018 = vmatmul.mubr.bf16.gmra.mrb[0].mxu0 %v912
    %v1019 = vpop.f32.mrb[0].mxu0
    %v1020 = vadd.f32 %v935, %v1019
    %v1021 = vpop.f32.mrb[0].mxu0
    %v1022 = vpop.f32.mrb[0].mxu0
    %v1023 = vadd.f32 %v935, %v1022
    %v1024 = vpop.f32.mrb[0].mxu0
    %1025 = vmatprep.mubr.bf16.mxu0 0
    %1026 = vmatmul.mubr.bf16.gmra.mrb[0].mxu0 %v913
    %v1027 = vpop.f32.mrb[0].mxu0
    %v1028 = vadd.f32 %v935, %v1027
    %v1029 = vpop.f32.mrb[0].mxu0
    %v1030 = vpop.f32.mrb[0].mxu0
    %v1031 = vadd.f32 %v935, %v1030
    %v1032 = vpop.f32.mrb[0].mxu0
    %1033 = vdwg.mxu0
    %1034 = vst [vmem:[#allocation10] sm:$0xff] %v1020
    %1035 = vst [vmem:[#allocation10 + $0x8] sm:$0xff] %v1023
    %1036 = vst [vmem:[#allocation10 + $0x10] sm:$0xff] %v1028
    %1037 = vst [vmem:[#allocation10 + $0x18] sm:$0xff] %v1031
    // Predicated region
    $region41: #{tpu_custom_call.1} parent=1 // pred_check
      _
    $region42: #{tpu_custom_call.1} parent=1 // pred_check_branch
      %1039 = sbr.rel (0) target = $region44
    $region43: #{tpu_custom_call.1} parent=1 // pred_region
      %s1041 = ssub.s32 512, 512
      %1042 = vsyncadd [#allocation6], %s1041
      %s1043 = sshll.u32 [#allocation10], 4
      %s1044 = int_to_ptr.vmem [resolvable:$true] %s1043
      %1049 = dma.vmem_to_hbm [thread:$0]  %s1044, 512, %s5, [#allocation6], 128, 128, 8
    $region44: #{tpu_custom_call.1} parent=1 // pred_fallthru
      _
    // Predicated region
    $region45: #{tpu_custom_call.1} parent=1 // pred_check
      _
    $region46: #{tpu_custom_call.1} parent=1 // pred_check_branch
      %1051 = sbr.rel (0) target = $region48
    $region47: #{tpu_custom_call.1} parent=1 // pred_region
      %1052 = dma.done [#allocation6], 512
    $region48: #{tpu_custom_call.1} parent=1 // pred_fallthru
      _
    %1053 = vsyncpa [#allocation5], 1
    %1054 = vsyncpa [#allocation8], 1
    %1055 = vsyncpa [#allocation6], 1

</llo_original>
